<compile_context>
chip_gen: v7x
topology: tpu7x:2x2x1
jax: 0.10.0
libtpu: 0.0.40
codegen_flags: <defaults>
</compile_context>

<pallas_src>
import functools

import jax
import jax.numpy as jnp
from jax import lax
from jax.experimental import pallas as pl
from jax.experimental.pallas import tpu as pltpu


# ----------------------------------------------------------------------------
# Pallas kernel: gated-attention MIL head for the whole batch (single call).
# ----------------------------------------------------------------------------
def mil_head_kernel(h_ref, wbig_ref, bbig_ref, wwt_ref, bw_ref, y_ref, a_ref,
                    *, bs, n, D, C_pad):
    # h_ref   : (bs*n, L)            instance features (f32 or bf16)
    # wbig_ref: (L, 2D + C_pad)      [Wv | Wu | Wc^T zero-padded]  (same dtype as H)
    # bbig_ref: (1, 2D + C_pad)      [bv | bu | 0]                 (f32)
    # wwt_ref : (D, C_pad)           per-class attention weights, transposed, zero-padded (f32)
    # bw_ref  : (1, C_pad)           per-class attention bias, zero-padded (f32)
    # y_ref   : (bs, C_pad)          logits (real classes in [:, :C])
    # a_ref   : (bs, n, C_pad)       attention maps (real classes in [..., :C])

    # Single fused projection: [V | U | Z] = H @ [Wv | Wu | Wc^T] + [bv | bu | 0]
    big = jnp.dot(h_ref[...], wbig_ref[...],
                  preferred_element_type=jnp.float32) + bbig_ref[...]   # (bs*n, 2D+C_pad) f32

    gated = jnp.tanh(big[:, :D]) * jax.nn.sigmoid(big[:, D:2 * D])      # (bs*n, D) f32
    z = big[:, 2 * D:]                                                  # (bs*n, C_pad) = H @ Wc^T

    # Per-class attention logits, classes padded to C_pad lanes (lane-dense MXU output).
    logits = jnp.dot(gated, wwt_ref[...],
                     preferred_element_type=jnp.float32) + bw_ref[...]  # (bs*n, C_pad)

    # Softmax over the instances of each bag (PyTorch: softmax(dim=2) after transpose(2,1)).
    logits3 = logits.reshape(bs, n, C_pad)
    m = jnp.max(logits3, axis=1, keepdims=True)
    e = jnp.exp(logits3 - m)
    s = jnp.sum(e, axis=1, keepdims=True)
    attn = e * pl.reciprocal(s, approx=True)                            # (bs, n, C_pad)

    # Y[b, c] = M[b, c, :] . Wc[c, :] = sum_i attn[b, i, c] * (H[b, i, :] . Wc[c, :])
    z3 = z.reshape(bs, n, C_pad)
    y = jnp.sum(attn * z3, axis=1)                                      # (bs, C_pad)

    y_ref[...] = y.astype(y_ref.dtype)
    a_ref[...] = attn.astype(a_ref.dtype)


def mil_attention_head(H, Wv, bv, Wu, bu, Ww, bw, Wc, *,
                       matmul_dtype=jnp.bfloat16):
    """Gated-attention MIL head.

    H: (bs, n, L) f32; Wv/Wu: (L, D); bv/bu: (D,); Ww: (C, D); bw: (C,);
    Wc: (C, L).  Returns (Y (bs, C), As (bs, C, n)), both f32.
    """
    bs, n, L = H.shape
    C, D = Ww.shape
    assert D % 128 == 0, "D must be lane-aligned for the fused column split"
    assert C <= 128, "classes are padded to one 128-lane tile"
    C_pad = 128  # lane-dense padded class dimension

    # Fused projection weights: [Wv | Wu | Wc^T(pad)] -> (L, 2D + C_pad)
    WcT_pad = jnp.zeros((L, C_pad), jnp.float32).at[:, :C].set(Wc.T)
    W_big = jnp.concatenate([Wv, Wu, WcT_pad], axis=1)
    b_big = jnp.concatenate(
        [bv, bu, jnp.zeros((C_pad,), jnp.float32)]).reshape(1, 2 * D + C_pad)

    # Pre-transposed + class-padded attention head (no in-kernel transpose).
    Wwt_pad = jnp.zeros((D, C_pad), jnp.float32).at[:, :C].set(Ww.T)
    bw_pad = jnp.zeros((1, C_pad), jnp.float32).at[0, :C].set(bw)

    # Only the big-matmul operands are cast; everything else stays f32.
    H_flat = H.reshape(bs * n, L).astype(matmul_dtype)
    W_big = W_big.astype(matmul_dtype)

    kernel = functools.partial(mil_head_kernel, bs=bs, n=n, D=D, C_pad=C_pad)
    vmem_spec = pl.BlockSpec(memory_space=pltpu.MemorySpace.VMEM)

    y_pad, a_pad = pl.pallas_call(
        kernel,
        out_shape=(
            jax.ShapeDtypeStruct((bs, C_pad), jnp.float32),
            jax.ShapeDtypeStruct((bs, n, C_pad), jnp.float32),
        ),
        in_specs=[vmem_spec] * 5,
        out_specs=(vmem_spec, vmem_spec),
    )(H_flat, W_big, b_big, Wwt_pad, bw_pad)

    # Wrapper-side layout plumbing: slice the real classes, match PyTorch layout.
    Y = y_pad[:, :C]                                 # (bs, C)
    As = jnp.swapaxes(a_pad, 1, 2)[:, :C, :]         # (bs, C, n)
    return Y, As


# ----------------------------------------------------------------------------
# Stand-in feature extractor (plain JAX glue).
# ----------------------------------------------------------------------------
def feature_extractor(x, conv_w, proj_w, proj_b):
    """x: (B, ch, h, w) NCHW -> features (B, L)."""
    y = lax.conv_general_dilated(
        x, conv_w, window_strides=(1, 1), padding="SAME",
        dimension_numbers=("NCHW", "OIHW", "NCHW"),
    )
    y = jax.nn.relu(y)
    y = jnp.mean(y, axis=(2, 3))                     # global average pool -> (B, Cconv)
    return y @ proj_w + proj_b                       # -> (B, L)


# ----------------------------------------------------------------------------
# Pure-JAX reference of the MIL head (PyTorch computation order).
# ----------------------------------------------------------------------------
def mil_head_ref(H, Wv, bv, Wu, bu, Ww, bw, Wc):
    av = jnp.tanh(H @ Wv + bv)                       # (bs, n, D)
    au = jax.nn.sigmoid(H @ Wu + bu)                 # (bs, n, D)
    logits = (av * au) @ Ww.T + bw                   # (bs, n, C)
    logits = jnp.swapaxes(logits, 1, 2)              # (bs, C, n)
    As = jax.nn.softmax(logits, axis=2)              # (bs, C, n)
    M = jnp.matmul(As, H)                            # (bs, C, L)
    Y = jnp.einsum("bcl,cl->bc", M, Wc)              # (bs, C)
    return Y, As


if __name__ == "__main__":
    # Small but module-consistent shapes.
    bs, num_instances, ch, hh, ww = 2, 8, 3, 16, 16
    L, D, num_classes = 512, 128, 2
    conv_ch = 16

    key = jax.random.PRNGKey(0)
    keys = jax.random.split(key, 10)

    x = jax.random.normal(keys[0], (bs, num_instances, ch, hh, ww), jnp.float32)

    conv_w = 0.1 * jax.random.normal(keys[1], (conv_ch, ch, 3, 3), jnp.float32)
    proj_w = 0.1 * jax.random.normal(keys[2], (conv_ch, L), jnp.float32)
    proj_b = 0.01 * jax.random.normal(keys[3], (L,), jnp.float32)

    Wv = 0.05 * jax.random.normal(keys[4], (L, D), jnp.float32)   # attention_V Linear (in, out)
    bv = 0.01 * jax.random.normal(keys[5], (D,), jnp.float32)
    Wu = 0.05 * jax.random.normal(keys[6], (L, D), jnp.float32)   # attention_U Linear (in, out)
    bu = 0.01 * jax.random.normal(keys[7], (D,), jnp.float32)
    Ww = 0.05 * jax.random.normal(keys[8], (num_classes, D), jnp.float32)  # attention_weights, stacked
    bw = jnp.zeros((num_classes,), jnp.float32)
    Wc = 0.05 * jax.random.normal(keys[9], (num_classes, L), jnp.float32)  # classifiers, stacked

    # ---- forward pass (eval mode; dropouts are identity) ----
    x_flat = x.reshape(bs * num_instances, ch, hh, ww)
    H = feature_extractor(x_flat, conv_w, proj_w, proj_b)          # (bs*n, L)
    H = H.reshape(bs, num_instances, L)

    Y_ref, As_ref = mil_head_ref(H, Wv, bv, Wu, bu, Ww, bw, Wc)

    # f32 path: faithful to the PyTorch module's arithmetic.
    Y, As = mil_attention_head(H, Wv, bv, Wu, bu, Ww, bw, Wc,
                               matmul_dtype=jnp.float32)
    Y = jax.block_until_ready(Y)
    As = jax.block_until_ready(As)
    assert Y.shape == (bs, num_classes)
    assert As.shape == (bs, num_classes, num_instances)
    assert jnp.allclose(Y, Y_ref, atol=5e-4, rtol=5e-3)
    assert jnp.allclose(As, As_ref, atol=5e-4, rtol=5e-3)

    # bf16 MXU-operand path (halved feature/weight HBM traffic, f32 accumulation).
    Y16, As16 = mil_attention_head(H, Wv, bv, Wu, bu, Ww, bw, Wc,
                                   matmul_dtype=jnp.bfloat16)
    Y16 = jax.block_until_ready(Y16)
    As16 = jax.block_until_ready(As16)
    assert jnp.allclose(Y16, Y_ref, atol=3e-2, rtol=3e-2)
    assert jnp.allclose(As16, As_ref, atol=3e-2, rtol=3e-2)

    print("KERNEL_OK")
</pallas_src>

<mosaic_0001>
module attributes {stable_mosaic.version = 11 : i64} {
  func.func @mil_head_kernel(%arg0: memref<16x512xf32, #tpu.memory_space<vmem>>, %arg1: memref<512x384xf32, #tpu.memory_space<vmem>>, %arg2: memref<1x384xf32, #tpu.memory_space<vmem>>, %arg3: memref<128x128xf32, #tpu.memory_space<vmem>>, %arg4: memref<1x128xf32, #tpu.memory_space<vmem>>, %arg5: memref<2x128xf32, #tpu.memory_space<vmem>>, %arg6: memref<2x8x128xf32, #tpu.memory_space<vmem>>) attributes {dimension_semantics = [], scalar_prefetch = 0 : i64, scratch_operands = 0 : i64, tpu.core_type = #tpu.core_type<tc>} {
    %c0 = arith.constant 0 : index
    %c0_0 = arith.constant 0 : index
    %0 = vector.load %arg0[%c0, %c0_0] : memref<16x512xf32, #tpu.memory_space<vmem>>, vector<16x512xf32>
    %c0_1 = arith.constant 0 : index
    %c0_2 = arith.constant 0 : index
    %1 = vector.load %arg1[%c0_1, %c0_2] : memref<512x384xf32, #tpu.memory_space<vmem>>, vector<512x384xf32>
    %cst = arith.constant dense<0.000000e+00> : vector<16x384xf32>
    %2 = tpu.matmul %0, %1, %cst {dimension_numbers = #tpu.dot_dimension_numbers<[1], [0], [0], [1], [0, 0, 1, 1], [], []>} : vector<16x512xf32>, vector<512x384xf32>, vector<16x384xf32> -> vector<16x384xf32>
    %c0_3 = arith.constant 0 : index
    %c0_4 = arith.constant 0 : index
    %3 = vector.load %arg2[%c0_3, %c0_4] : memref<1x384xf32, #tpu.memory_space<vmem>>, vector<1x384xf32>
    %4 = vector.broadcast %3 : vector<1x384xf32> to vector<16x384xf32>
    %5 = arith.addf %2, %4 : vector<16x384xf32>
    %6 = vector.extract_strided_slice %5 {offsets = [0, 0], sizes = [16, 128], strides = [1, 1]} : vector<16x384xf32> to vector<16x128xf32>
    %7 = math.tanh %6 : vector<16x128xf32>
    %8 = vector.extract_strided_slice %5 {offsets = [0, 128], sizes = [16, 128], strides = [1, 1]} : vector<16x384xf32> to vector<16x128xf32>
    %9 = arith.negf %8 : vector<16x128xf32>
    %10 = math.exp %9 : vector<16x128xf32>
    %cst_5 = arith.constant 1.000000e+00 : f32
    %11 = vector.broadcast %cst_5 : f32 to vector<16x128xf32>
    %12 = arith.addf %11, %10 : vector<16x128xf32>
    %13 = arith.divf %11, %12 : vector<16x128xf32>
    %14 = arith.mulf %7, %13 : vector<16x128xf32>
    %15 = vector.extract_strided_slice %5 {offsets = [0, 256], sizes = [16, 128], strides = [1, 1]} : vector<16x384xf32> to vector<16x128xf32>
    %c0_6 = arith.constant 0 : index
    %c0_7 = arith.constant 0 : index
    %16 = vector.load %arg3[%c0_6, %c0_7] : memref<128x128xf32, #tpu.memory_space<vmem>>, vector<128x128xf32>
    %cst_8 = arith.constant dense<0.000000e+00> : vector<16x128xf32>
    %17 = tpu.matmul %14, %16, %cst_8 {dimension_numbers = #tpu.dot_dimension_numbers<[1], [0], [0], [1], [0, 0, 1, 1], [], []>} : vector<16x128xf32>, vector<128x128xf32>, vector<16x128xf32> -> vector<16x128xf32>
    %c0_9 = arith.constant 0 : index
    %c0_10 = arith.constant 0 : index
    %18 = vector.load %arg4[%c0_9, %c0_10] : memref<1x128xf32, #tpu.memory_space<vmem>>, vector<1x128xf32>
    %19 = vector.broadcast %18 : vector<1x128xf32> to vector<16x128xf32>
    %20 = arith.addf %17, %19 : vector<16x128xf32>
    %21 = vector.shape_cast %20 : vector<16x128xf32> to vector<2x8x128xf32>
    %cst_11 = arith.constant dense<0xFF800000> : vector<2x128xf32>
    %22 = vector.multi_reduction <maximumf>, %21, %cst_11 [1] : vector<2x8x128xf32> to vector<2x128xf32>
    %23 = vector.shape_cast %22 : vector<2x128xf32> to vector<2x1x128xf32>
    %24 = vector.broadcast %23 : vector<2x1x128xf32> to vector<2x8x128xf32>
    %25 = arith.subf %21, %24 : vector<2x8x128xf32>
    %26 = math.exp %25 : vector<2x8x128xf32>
    %cst_12 = arith.constant dense<0.000000e+00> : vector<2x128xf32>
    %27 = vector.multi_reduction <add>, %26, %cst_12 [1] : vector<2x8x128xf32> to vector<2x128xf32>
    %28 = vector.shape_cast %27 : vector<2x128xf32> to vector<2x1x128xf32>
    %29 = tpu.reciprocal %28 {approx = true} : vector<2x1x128xf32> -> vector<2x1x128xf32>
    %30 = vector.broadcast %29 : vector<2x1x128xf32> to vector<2x8x128xf32>
    %31 = arith.mulf %26, %30 : vector<2x8x128xf32>
    %32 = vector.shape_cast %15 : vector<16x128xf32> to vector<2x8x128xf32>
    %33 = arith.mulf %31, %32 : vector<2x8x128xf32>
    %cst_13 = arith.constant dense<0.000000e+00> : vector<2x128xf32>
    %34 = vector.multi_reduction <add>, %33, %cst_13 [1] : vector<2x8x128xf32> to vector<2x128xf32>
    %c0_14 = arith.constant 0 : index
    %c0_15 = arith.constant 0 : index
    %35 = vector.load %arg5[%c0_14, %c0_15] : memref<2x128xf32, #tpu.memory_space<vmem>>, vector<2x128xf32>
    tpu.vector_store %arg5[%c0_14, %c0_15], %34 {strides = array<i32>} : memref<2x128xf32, #tpu.memory_space<vmem>>, vector<2x128xf32>,
    %c0_16 = arith.constant 0 : index
    %c0_17 = arith.constant 0 : index
    %c0_18 = arith.constant 0 : index
    %36 = vector.load %arg6[%c0_16, %c0_17, %c0_18] : memref<2x8x128xf32, #tpu.memory_space<vmem>>, vector<2x8x128xf32>
    tpu.vector_store %arg6[%c0_16, %c0_17, %c0_18], %31 {strides = array<i32>} : memref<2x8x128xf32, #tpu.memory_space<vmem>>, vector<2x8x128xf32>,
    return
  }
}

</mosaic_0001>

<llo_original>
// kernel: tpu_custom_call.1
$region0: #{tpu_custom_call.1}
  #allocation0 [shape = 'u32[]', space=smem, size = 0x4, offset = 0x4, fixed_abs, tag = 'smem constant byte address 0x4 - core index']
  #allocation1 [shape = 'u32[144,128]{1,0:T(1,128)}', space=vmem, size = 0x12000, scoped, tag = 'internal scratch']
  %s0 = inlined_call_operand.hbm [shape: f32[16,512], index: 0, kind: input, shape index: {}]
  %s1 = inlined_call_operand.hbm [shape: f32[512,384], index: 1, kind: input, shape index: {}]
  %s2 = inlined_call_operand.vmem [shape: f32[1,384], index: 2, kind: input, shape index: {}]
  %s3 = inlined_call_operand.hbm [shape: f32[128,128], index: 3, kind: input, shape index: {}]
  %s4 = inlined_call_operand.vmem [shape: f32[1,128], index: 4, kind: input, shape index: {}]
  %s5 = inlined_call_operand.hbm [shape: f32[2,128], index: 5, kind: output, shape index: {0}]
  %s6 = inlined_call_operand.hbm [shape: f32[2,8,128], index: 6, kind: output, shape index: {1}]
  %7 = xla_tuple %s5, %s6
  %s8 = sld [smem:[#allocation0]]
  $region50: #{tpu_custom_call.1} parent=0
    _
  %s10 = ssub.s32 1, %s8
  %s11 = scalar_select 0, %s10, %s8
  $region1: #{tpu_custom_call.1} parent=0
    #allocation2 [shape = 'u8[32768]{0}', space=vmem, size = 0x8000, scoped, tag = 'input window, operand 0, single buffered']
    #allocation3 [shape = 's32[1]{0}', space=sflag, size = 0x4, scoped, tag = 'scoped memory for tpu_custom_call.1']
    #allocation4 [shape = 's32[1]{0}', space=sflag, size = 0x4, scoped, tag = 'scoped memory for tpu_custom_call.1']
    #allocation5 [shape = 'u8[786432]{0}', space=vmem, size = 0xc0000, scoped, tag = 'input window, operand 1, single buffered']
    #allocation6 [shape = 's32[1]{0}', space=sflag, size = 0x4, scoped, tag = 'scoped memory for tpu_custom_call.1']
    #allocation7 [shape = 'u8[65536]{0}', space=vmem, size = 0x10000, scoped, tag = 'input window, operand 3, single buffered']
    #allocation8 [shape = 'u8[1024]{0}', space=vmem, size = 0x400, scoped, tag = 'output window, operand 0, single buffered']
    #allocation9 [shape = 'u8[8192]{0}', space=vmem, size = 0x2000, scoped, tag = 'output window, operand 1, single buffered']
    #allocation10 [shape = 's32[1]{0}', space=sflag, size = 0x4, scoped, tag = 'scoped memory for tpu_custom_call.1']
    %12 = vsyncpa [#allocation3], 0
    %13 = vsyncpa [#allocation6], 0
    %14 = vsyncpa [#allocation4], 0
    %15 = vsyncpa [#allocation10], 0
    // Predicated region
    $region2: #{tpu_custom_call.1} parent=1 // pred_check
      _
    $region3: #{tpu_custom_call.1} parent=1 // pred_check_branch
      %17 = sbr.rel (0) target = $region5
    $region4: #{tpu_custom_call.1} parent=1 // pred_region
      %s19 = ssub.s32 1024, 1024
      %20 = vsyncadd [#allocation3], %s19
      %s21 = sshll.u32 [#allocation2], 4
      %s22 = int_to_ptr.vmem [resolvable:$true] %s21
      %27 = dma.hbm_to_vmem [thread:$0]  %s0, 1024, %s22, [#allocation3], 512, 512, 32
    $region5: #{tpu_custom_call.1} parent=1 // pred_fallthru
      _
    // Predicated region
    $region6: #{tpu_custom_call.1} parent=1 // pred_check
      _
    $region7: #{tpu_custom_call.1} parent=1 // pred_check_branch
      %29 = sbr.rel (0) target = $region9
    $region8: #{tpu_custom_call.1} parent=1 // pred_region
      %s31 = ssub.s32 24576, 24576
      %32 = vsyncadd [#allocation6], %s31
      %s33 = sshll.u32 [#allocation5], 4
      %s34 = int_to_ptr.vmem [resolvable:$true] %s33
      %39 = dma.hbm_to_vmem [thread:$0]  %s1, 24576, %s34, [#allocation6], 384, 384, 24
    $region9: #{tpu_custom_call.1} parent=1 // pred_fallthru
      _
    // Predicated region
    $region10: #{tpu_custom_call.1} parent=1 // pred_check
      _
    $region11: #{tpu_custom_call.1} parent=1 // pred_check_branch
      %41 = sbr.rel (0) target = $region13
    $region12: #{tpu_custom_call.1} parent=1 // pred_region
      _
    $region13: #{tpu_custom_call.1} parent=1 // pred_fallthru
      _
    // Predicated region
    $region14: #{tpu_custom_call.1} parent=1 // pred_check
      _
    $region15: #{tpu_custom_call.1} parent=1 // pred_check_branch
      %43 = sbr.rel (0) target = $region17
    $region16: #{tpu_custom_call.1} parent=1 // pred_region
      %s45 = ssub.s32 2048, 2048
      %46 = vsyncadd [#allocation6], %s45
      %s47 = sshll.u32 [#allocation7], 4
      %s48 = int_to_ptr.vmem [resolvable:$true] %s47
      %53 = dma.hbm_to_vmem [thread:$0]  %s3, 2048, %s48, [#allocation6], 128, 128, 8
    $region17: #{tpu_custom_call.1} parent=1 // pred_fallthru
      _
    // Predicated region
    $region18: #{tpu_custom_call.1} parent=1 // pred_check
      _
    $region19: #{tpu_custom_call.1} parent=1 // pred_check_branch
      %55 = sbr.rel (0) target = $region21
    $region20: #{tpu_custom_call.1} parent=1 // pred_region
      _
    $region21: #{tpu_custom_call.1} parent=1 // pred_fallthru
      _
    // Predicated region
    $region22: #{tpu_custom_call.1} parent=1 // pred_check
      _
    $region23: #{tpu_custom_call.1} parent=1 // pred_check_branch
      %57 = sbr.rel (0) target = $region25
    $region24: #{tpu_custom_call.1} parent=1 // pred_region
      %58 = dma.done [#allocation3], 1024
    $region25: #{tpu_custom_call.1} parent=1 // pred_fallthru
      _
    // Predicated region
    $region26: #{tpu_custom_call.1} parent=1 // pred_check
      _
    $region27: #{tpu_custom_call.1} parent=1 // pred_check_branch
      %60 = sbr.rel (0) target = $region29
    $region28: #{tpu_custom_call.1} parent=1 // pred_region
      %61 = dma.done [#allocation6], 24576
    $region29: #{tpu_custom_call.1} parent=1 // pred_fallthru
      _
    // Predicated region
    $region30: #{tpu_custom_call.1} parent=1 // pred_check
      _
    $region31: #{tpu_custom_call.1} parent=1 // pred_check_branch
      %63 = sbr.rel (0) target = $region33
    $region32: #{tpu_custom_call.1} parent=1 // pred_region
      %64 = dma.done [#allocation6], 2048
    $region33: #{tpu_custom_call.1} parent=1 // pred_fallthru
      _
    %v65 = vld [vmem:[#allocation2] sm:$0xff]
    %v66 = vld [vmem:[#allocation2 + $0x8] sm:$0xff]
    %v67 = vld [vmem:[#allocation2 + $0x10] sm:$0xff]
    %v68 = vld [vmem:[#allocation2 + $0x18] sm:$0xff]
    %v69 = vld [vmem:[#allocation2 + $0x20] sm:$0xff]
    %v70 = vld [vmem:[#allocation2 + $0x28] sm:$0xff]
    %v71 = vld [vmem:[#allocation2 + $0x30] sm:$0xff]
    %v72 = vld [vmem:[#allocation2 + $0x38] sm:$0xff]
    %v73 = vld [vmem:[#allocation5] sm:$0xff]
    %v74 = vld [vmem:[#allocation5 + $0x8] sm:$0xff]
    %v75 = vld [vmem:[#allocation5 + $0x10] sm:$0xff]
    %v76 = vld [vmem:[#allocation5 + $0x18] sm:$0xff]
    %v77 = vld [vmem:[#allocation5 + $0x20] sm:$0xff]
    %v78 = vld [vmem:[#allocation5 + $0x28] sm:$0xff]
    %v79 = vld [vmem:[#allocation5 + $0x30] sm:$0xff]
    %v80 = vld [vmem:[#allocation5 + $0x38] sm:$0xff]
    %v81 = vld [vmem:[#allocation5 + $0x40] sm:$0xff]
    %v82 = vld [vmem:[#allocation5 + $0x48] sm:$0xff]
    %v83 = vld [vmem:[#allocation5 + $0x50] sm:$0xff]
    %v84 = vld [vmem:[#allocation5 + $0x58] sm:$0xff]
    %v85 = vld [vmem:[#allocation5 + $0x60] sm:$0xff]
    %v86 = vld [vmem:[#allocation5 + $0x68] sm:$0xff]
    %v87 = vld [vmem:[#allocation5 + $0x70] sm:$0xff]
    %v88 = vld [vmem:[#allocation5 + $0x78] sm:$0xff]
    %v89 = vld [vmem:[#allocation5 + $0x80] sm:$0xff]
    %v90 = vld [vmem:[#allocation5 + $0x88] sm:$0xff]
    %v91 = vld [vmem:[#allocation5 + $0x90] sm:$0xff]
    %v92 = vld [vmem:[#allocation5 + $0x98] sm:$0xff]
    %v93 = vld [vmem:[#allocation5 + $0xa0] sm:$0xff]
    %v94 = vld [vmem:[#allocation5 + $0xa8] sm:$0xff]
    %v95 = vld [vmem:[#allocation5 + $0xb0] sm:$0xff]
    %v96 = vld [vmem:[#allocation5 + $0xb8] sm:$0xff]
    %v97 = vld [vmem:[#allocation5 + $0xc0] sm:$0xff]
    %v98 = vld [vmem:[#allocation5 + $0xc8] sm:$0xff]
    %v99 = vld [vmem:[#allocation5 + $0xd0] sm:$0xff]
    %v100 = vld [vmem:[#allocation5 + $0xd8] sm:$0xff]
    %v101 = vld [vmem:[#allocation5 + $0xe0] sm:$0xff]
    %v102 = vld [vmem:[#allocation5 + $0xe8] sm:$0xff]
    %v103 = vld [vmem:[#allocation5 + $0xf0] sm:$0xff]
    %v104 = vld [vmem:[#allocation5 + $0xf8] sm:$0xff]
    %v105 = vld [vmem:[#allocation5 + $0x100] sm:$0xff]
    %v106 = vld [vmem:[#allocation5 + $0x108] sm:$0xff]
    %v107 = vld [vmem:[#allocation5 + $0x110] sm:$0xff]
    %v108 = vld [vmem:[#allocation5 + $0x118] sm:$0xff]
    %v109 = vld [vmem:[#allocation5 + $0x120] sm:$0xff]
    %v110 = vld [vmem:[#allocation5 + $0x128] sm:$0xff]
    %v111 = vld [vmem:[#allocation5 + $0x130] sm:$0xff]
    %v112 = vld [vmem:[#allocation5 + $0x138] sm:$0xff]
    %v113 = vld [vmem:[#allocation5 + $0x140] sm:$0xff]
    %v114 = vld [vmem:[#allocation5 + $0x148] sm:$0xff]
    %v115 = vld [vmem:[#allocation5 + $0x150] sm:$0xff]
    %v116 = vld [vmem:[#allocation5 + $0x158] sm:$0xff]
    %v117 = vld [vmem:[#allocation5 + $0x160] sm:$0xff]
    %v118 = vld [vmem:[#allocation5 + $0x168] sm:$0xff]
    %v119 = vld [vmem:[#allocation5 + $0x170] sm:$0xff]
    %v120 = vld [vmem:[#allocation5 + $0x178] sm:$0xff]
    %v121 = vld [vmem:[#allocation5 + $0x180] sm:$0xff]
    %v122 = vld [vmem:[#allocation5 + $0x188] sm:$0xff]
    %v123 = vld [vmem:[#allocation5 + $0x190] sm:$0xff]
    %v124 = vld [vmem:[#allocation5 + $0x198] sm:$0xff]
    %v125 = vld [vmem:[#allocation5 + $0x1a0] sm:$0xff]
    %v126 = vld [vmem:[#allocation5 + $0x1a8] sm:$0xff]
    %v127 = vld [vmem:[#allocation5 + $0x1b0] sm:$0xff]
    %v128 = vld [vmem:[#allocation5 + $0x1b8] sm:$0xff]
    %v129 = vld [vmem:[#allocation5 + $0x1c0] sm:$0xff]
    %v130 = vld [vmem:[#allocation5 + $0x1c8] sm:$0xff]
    %v131 = vld [vmem:[#allocation5 + $0x1d0] sm:$0xff]
    %v132 = vld [vmem:[#allocation5 + $0x1d8] sm:$0xff]
    %v133 = vld [vmem:[#allocation5 + $0x1e0] sm:$0xff]
    %v134 = vld [vmem:[#allocation5 + $0x1e8] sm:$0xff]
    %v135 = vld [vmem:[#allocation5 + $0x1f0] sm:$0xff]
    %v136 = vld [vmem:[#allocation5 + $0x1f8] sm:$0xff]
    %v137 = vld [vmem:[#allocation5 + $0x200] sm:$0xff]
    %v138 = vld [vmem:[#allocation5 + $0x208] sm:$0xff]
    %v139 = vld [vmem:[#allocation5 + $0x210] sm:$0xff]
    %v140 = vld [vmem:[#allocation5 + $0x218] sm:$0xff]
    %v141 = vld [vmem:[#allocation5 + $0x220] sm:$0xff]
    %v142 = vld [vmem:[#allocation5 + $0x228] sm:$0xff]
    %v143 = vld [vmem:[#allocation5 + $0x230] sm:$0xff]
    %v144 = vld [vmem:[#allocation5 + $0x238] sm:$0xff]
    %v145 = vld [vmem:[#allocation5 + $0x240] sm:$0xff]
    %v146 = vld [vmem:[#allocation5 + $0x248] sm:$0xff]
    %v147 = vld [vmem:[#allocation5 + $0x250] sm:$0xff]
    %v148 = vld [vmem:[#allocation5 + $0x258] sm:$0xff]
    %v149 = vld [vmem:[#allocation5 + $0x260] sm:$0xff]
    %v150 = vld [vmem:[#allocation5 + $0x268] sm:$0xff]
    %v151 = vld [vmem:[#allocation5 + $0x270] sm:$0xff]
    %v152 = vld [vmem:[#allocation5 + $0x278] sm:$0xff]
    %v153 = vld [vmem:[#allocation5 + $0x280] sm:$0xff]
    %v154 = vld [vmem:[#allocation5 + $0x288] sm:$0xff]
    %v155 = vld [vmem:[#allocation5 + $0x290] sm:$0xff]
    %v156 = vld [vmem:[#allocation5 + $0x298] sm:$0xff]
    %v157 = vld [vmem:[#allocation5 + $0x2a0] sm:$0xff]
    %v158 = vld [vmem:[#allocation5 + $0x2a8] sm:$0xff]
    %v159 = vld [vmem:[#allocation5 + $0x2b0] sm:$0xff]
    %v160 = vld [vmem:[#allocation5 + $0x2b8] sm:$0xff]
    %v161 = vld [vmem:[#allocation5 + $0x2c0] sm:$0xff]
    %v162 = vld [vmem:[#allocation5 + $0x2c8] sm:$0xff]
    %v163 = vld [vmem:[#allocation5 + $0x2d0] sm:$0xff]
    %v164 = vld [vmem:[#allocation5 + $0x2d8] sm:$0xff]
    %v165 = vld [vmem:[#allocation5 + $0x2e0] sm:$0xff]
    %v166 = vld [vmem:[#allocation5 + $0x2e8] sm:$0xff]
    %v167 = vld [vmem:[#allocation5 + $0x2f0] sm:$0xff]
    %v168 = vld [vmem:[#allocation5 + $0x2f8] sm:$0xff]
    %v169 = vld [vmem:[#allocation5 + $0x300] sm:$0xff]
    %v170 = vld [vmem:[#allocation5 + $0x308] sm:$0xff]
    %v171 = vld [vmem:[#allocation5 + $0x310] sm:$0xff]
    %v172 = vld [vmem:[#allocation5 + $0x318] sm:$0xff]
    %v173 = vld [vmem:[#allocation5 + $0x320] sm:$0xff]
    %v174 = vld [vmem:[#allocation5 + $0x328] sm:$0xff]
    %v175 = vld [vmem:[#allocation5 + $0x330] sm:$0xff]
    %v176 = vld [vmem:[#allocation5 + $0x338] sm:$0xff]
    %v177 = vld [vmem:[#allocation5 + $0x340] sm:$0xff]
    %v178 = vld [vmem:[#allocation5 + $0x348] sm:$0xff]
    %v179 = vld [vmem:[#allocation5 + $0x350] sm:$0xff]
    %v180 = vld [vmem:[#allocation5 + $0x358] sm:$0xff]
    %v181 = vld [vmem:[#allocation5 + $0x360] sm:$0xff]
    %v182 = vld [vmem:[#allocation5 + $0x368] sm:$0xff]
    %v183 = vld [vmem:[#allocation5 + $0x370] sm:$0xff]
    %v184 = vld [vmem:[#allocation5 + $0x378] sm:$0xff]
    %v185 = vld [vmem:[#allocation5 + $0x380] sm:$0xff]
    %v186 = vld [vmem:[#allocation5 + $0x388] sm:$0xff]
    %v187 = vld [vmem:[#allocation5 + $0x390] sm:$0xff]
    %v188 = vld [vmem:[#allocation5 + $0x398] sm:$0xff]
    %v189 = vld [vmem:[#allocation5 + $0x3a0] sm:$0xff]
    %v190 = vld [vmem:[#allocation5 + $0x3a8] sm:$0xff]
    %v191 = vld [vmem:[#allocation5 + $0x3b0] sm:$0xff]
    %v192 = vld [vmem:[#allocation5 + $0x3b8] sm:$0xff]
    %v193 = vld [vmem:[#allocation5 + $0x3c0] sm:$0xff]
    %v194 = vld [vmem:[#allocation5 + $0x3c8] sm:$0xff]
    %v195 = vld [vmem:[#allocation5 + $0x3d0] sm:$0xff]
    %v196 = vld [vmem:[#allocation5 + $0x3d8] sm:$0xff]
    %v197 = vld [vmem:[#allocation5 + $0x3e0] sm:$0xff]
    %v198 = vld [vmem:[#allocation5 + $0x3e8] sm:$0xff]
    %v199 = vld [vmem:[#allocation5 + $0x3f0] sm:$0xff]
    %v200 = vld [vmem:[#allocation5 + $0x3f8] sm:$0xff]
    %v201 = vld [vmem:[#allocation5 + $0x400] sm:$0xff]
    %v202 = vld [vmem:[#allocation5 + $0x408] sm:$0xff]
    %v203 = vld [vmem:[#allocation5 + $0x410] sm:$0xff]
    %v204 = vld [vmem:[#allocation5 + $0x418] sm:$0xff]
    %v205 = vld [vmem:[#allocation5 + $0x420] sm:$0xff]
    %v206 = vld [vmem:[#allocation5 + $0x428] sm:$0xff]
    %v207 = vld [vmem:[#allocation5 + $0x430] sm:$0xff]
    %v208 = vld [vmem:[#allocation5 + $0x438] sm:$0xff]
    %v209 = vld [vmem:[#allocation5 + $0x440] sm:$0xff]
    %v210 = vld [vmem:[#allocation5 + $0x448] sm:$0xff]
    %v211 = vld [vmem:[#allocation5 + $0x450] sm:$0xff]
    %v212 = vld [vmem:[#allocation5 + $0x458] sm:$0xff]
    %v213 = vld [vmem:[#allocation5 + $0x460] sm:$0xff]
    %v214 = vld [vmem:[#allocation5 + $0x468] sm:$0xff]
    %v215 = vld [vmem:[#allocation5 + $0x470] sm:$0xff]
    %v216 = vld [vmem:[#allocation5 + $0x478] sm:$0xff]
    %v217 = vld [vmem:[#allocation5 + $0x480] sm:$0xff]
    %v218 = vld [vmem:[#allocation5 + $0x488] sm:$0xff]
    %v219 = vld [vmem:[#allocation5 + $0x490] sm:$0xff]
    %v220 = vld [vmem:[#allocation5 + $0x498] sm:$0xff]
    %v221 = vld [vmem:[#allocation5 + $0x4a0] sm:$0xff]
    %v222 = vld [vmem:[#allocation5 + $0x4a8] sm:$0xff]
    %v223 = vld [vmem:[#allocation5 + $0x4b0] sm:$0xff]
    %v224 = vld [vmem:[#allocation5 + $0x4b8] sm:$0xff]
    %v225 = vld [vmem:[#allocation5 + $0x4c0] sm:$0xff]
    %v226 = vld [vmem:[#allocation5 + $0x4c8] sm:$0xff]
    %v227 = vld [vmem:[#allocation5 + $0x4d0] sm:$0xff]
    %v228 = vld [vmem:[#allocation5 + $0x4d8] sm:$0xff]
    %v229 = vld [vmem:[#allocation5 + $0x4e0] sm:$0xff]
    %v230 = vld [vmem:[#allocation5 + $0x4e8] sm:$0xff]
    %v231 = vld [vmem:[#allocation5 + $0x4f0] sm:$0xff]
    %v232 = vld [vmem:[#allocation5 + $0x4f8] sm:$0xff]
    %v233 = vld [vmem:[#allocation5 + $0x500] sm:$0xff]
    %v234 = vld [vmem:[#allocation5 + $0x508] sm:$0xff]
    %v235 = vld [vmem:[#allocation5 + $0x510] sm:$0xff]
    %v236 = vld [vmem:[#allocation5 + $0x518] sm:$0xff]
    %v237 = vld [vmem:[#allocation5 + $0x520] sm:$0xff]
    %v238 = vld [vmem:[#allocation5 + $0x528] sm:$0xff]
    %v239 = vld [vmem:[#allocation5 + $0x530] sm:$0xff]
    %v240 = vld [vmem:[#allocation5 + $0x538] sm:$0xff]
    %v241 = vld [vmem:[#allocation5 + $0x540] sm:$0xff]
    %v242 = vld [vmem:[#allocation5 + $0x548] sm:$0xff]
    %v243 = vld [vmem:[#allocation5 + $0x550] sm:$0xff]
    %v244 = vld [vmem:[#allocation5 + $0x558] sm:$0xff]
    %v245 = vld [vmem:[#allocation5 + $0x560] sm:$0xff]
    %v246 = vld [vmem:[#allocation5 + $0x568] sm:$0xff]
    %v247 = vld [vmem:[#allocation5 + $0x570] sm:$0xff]
    %v248 = vld [vmem:[#allocation5 + $0x578] sm:$0xff]
    %v249 = vld [vmem:[#allocation5 + $0x580] sm:$0xff]
    %v250 = vld [vmem:[#allocation5 + $0x588] sm:$0xff]
    %v251 = vld [vmem:[#allocation5 + $0x590] sm:$0xff]
    %v252 = vld [vmem:[#allocation5 + $0x598] sm:$0xff]
    %v253 = vld [vmem:[#allocation5 + $0x5a0] sm:$0xff]
    %v254 = vld [vmem:[#allocation5 + $0x5a8] sm:$0xff]
    %v255 = vld [vmem:[#allocation5 + $0x5b0] sm:$0xff]
    %v256 = vld [vmem:[#allocation5 + $0x5b8] sm:$0xff]
    %v257 = vld [vmem:[#allocation5 + $0x5c0] sm:$0xff]
    %v258 = vld [vmem:[#allocation5 + $0x5c8] sm:$0xff]
    %v259 = vld [vmem:[#allocation5 + $0x5d0] sm:$0xff]
    %v260 = vld [vmem:[#allocation5 + $0x5d8] sm:$0xff]
    %v261 = vld [vmem:[#allocation5 + $0x5e0] sm:$0xff]
    %v262 = vld [vmem:[#allocation5 + $0x5e8] sm:$0xff]
    %v263 = vld [vmem:[#allocation5 + $0x5f0] sm:$0xff]
    %v264 = vld [vmem:[#allocation5 + $0x5f8] sm:$0xff]
    %v265 = vld [vmem:[%s2] sm:$0x7]
    %v267 = vlaneseq
    %v268 = vshrl.u32 %v267, 7
    %v269 = vsub.s32 0, %v268
    %v270 = vrot.slane %v265, %v269
    %v271 = vlaneseq
    %v272 = vshrl.u32 %v271, 7
    %v273 = vsub.s32 1, %v272
    %v274 = vrot.slane %v265, %v273
    %v275 = vlaneseq
    %v276 = vshrl.u32 %v275, 7
    %v277 = vsub.s32 2, %v276
    %v278 = vrot.slane %v265, %v277
    %282 = vmatprep.subr.mxu0 %v74
    %283 = vmatpush1.msra.mxu0 %v73
    %284 = vmatprep.subr.mxu0 %v77
    %285 = vmatpush1.msra.mxu0 %v76
    %286 = vmatprep.subr.mxu0 %v80
    %287 = vmatpush1.msra.mxu0 %v79
    %288 = vmatprep.subr.mxu0 %v83
    %289 = vmatpush1.msra.mxu0 %v82
    %290 = vmatprep.subr.mxu0 %v86
    %291 = vmatpush1.msra.mxu0 %v85
    %292 = vmatprep.subr.mxu0 %v89
    %293 = vmatpush1.msra.mxu0 %v88
    %294 = vmatprep.subr.mxu0 %v92
    %295 = vmatpush1.msra.mxu0 %v91
    %296 = vmatprep.subr.mxu0 %v95
    %297 = vmatpush1.msra.mxu0 %v94
    %298 = vmatprep.subr.mxu0 %v98
    %299 = vmatpush1.msra.mxu0 %v97
    %300 = vmatprep.subr.mxu0 %v101
    %301 = vmatpush1.msra.mxu0 %v100
    %302 = vmatprep.subr.mxu0 %v104
    %303 = vmatpush1.msra.mxu0 %v103
    %304 = vmatprep.subr.mxu0 %v107
    %305 = vmatpush1.msra.mxu0 %v106
    %306 = vmatprep.subr.mxu0 %v110
    %307 = vmatpush1.msra.mxu0 %v109
    %308 = vmatprep.subr.mxu0 %v113
    %309 = vmatpush1.msra.mxu0 %v112
    %310 = vmatprep.subr.mxu0 %v116
    %311 = vmatpush1.msra.mxu0 %v115
    %312 = vmatprep.subr.mxu0 %v119
    %313 = vmatpush1.msra.mxu0 %v118
    %314 = vmatprep.subr.mxu0 %v122
    %315 = vmatpush1.msra.mxu0 %v121
    %316 = vmatprep.subr.mxu0 %v125
    %317 = vmatpush1.msra.mxu0 %v124
    %318 = vmatprep.subr.mxu0 %v128
    %319 = vmatpush1.msra.mxu0 %v127
    %320 = vmatprep.subr.mxu0 %v131
    %321 = vmatpush1.msra.mxu0 %v130
    %322 = vmatprep.subr.mxu0 %v134
    %323 = vmatpush1.msra.mxu0 %v133
    %324 = vmatprep.subr.mxu0 %v137
    %325 = vmatpush1.msra.mxu0 %v136
    %326 = vmatprep.subr.mxu0 %v140
    %327 = vmatpush1.msra.mxu0 %v139
    %328 = vmatprep.subr.mxu0 %v143
    %329 = vmatpush1.msra.mxu0 %v142
    %330 = vmatprep.subr.mxu0 %v146
    %331 = vmatpush1.msra.mxu0 %v145
    %332 = vmatprep.subr.mxu0 %v149
    %333 = vmatpush1.msra.mxu0 %v148
    %334 = vmatprep.subr.mxu0 %v152
    %335 = vmatpush1.msra.mxu0 %v151
    %336 = vmatprep.subr.mxu0 %v155
    %337 = vmatpush1.msra.mxu0 %v154
    %338 = vmatprep.subr.mxu0 %v158
    %339 = vmatpush1.msra.mxu0 %v157
    %340 = vmatprep.subr.mxu0 %v161
    %341 = vmatpush1.msra.mxu0 %v160
    %342 = vmatprep.subr.mxu0 %v164
    %343 = vmatpush1.msra.mxu0 %v163
    %344 = vmatprep.subr.mxu0 %v167
    %345 = vmatpush1.msra.mxu0 %v166
    %346 = vmatprep.mubr.f32.mxu0 %v66
    %347 = vmatmul.mubr.f32.gmra.mrb[0].mxu0 %v65
    %v348 = vpop.f32.mrb[0].mxu0
    %v349 = vadd.f32 %v270, %v348
    %v350 = vpop.f32.mrb[0].mxu0
    %v351 = vadd.f32 %v274, %v350
    %352 = vmatprep.mubr.f32.mxu0 %v70
    %353 = vmatmul.mubr.f32.gmra.mrb[0].mxu0 %v69
    %v354 = vpop.f32.mrb[0].mxu0
    %v355 = vadd.f32 %v270, %v354
    %v356 = vpop.f32.mrb[0].mxu0
    %v357 = vadd.f32 %v274, %v356
    %358 = vdwg.mxu0
    %359 = vmatprep.subr.mxu0 %v170
    %360 = vmatpush1.msra.mxu0 %v169
    %361 = vmatprep.subr.mxu0 %v173
    %362 = vmatpush1.msra.mxu0 %v172
    %363 = vmatprep.subr.mxu0 %v176
    %364 = vmatpush1.msra.mxu0 %v175
    %365 = vmatprep.subr.mxu0 %v179
    %366 = vmatpush1.msra.mxu0 %v178
    %367 = vmatprep.subr.mxu0 %v182
    %368 = vmatpush1.msra.mxu0 %v181
    %369 = vmatprep.subr.mxu0 %v185
    %370 = vmatpush1.msra.mxu0 %v184
    %371 = vmatprep.subr.mxu0 %v188
    %372 = vmatpush1.msra.mxu0 %v187
    %373 = vmatprep.subr.mxu0 %v191
    %374 = vmatpush1.msra.mxu0 %v190
    %375 = vmatprep.subr.mxu0 %v194
    %376 = vmatpush1.msra.mxu0 %v193
    %377 = vmatprep.subr.mxu0 %v197
    %378 = vmatpush1.msra.mxu0 %v196
    %379 = vmatprep.subr.mxu0 %v200
    %380 = vmatpush1.msra.mxu0 %v199
    %381 = vmatprep.subr.mxu0 %v203
    %382 = vmatpush1.msra.mxu0 %v202
    %383 = vmatprep.subr.mxu0 %v206
    %384 = vmatpush1.msra.mxu0 %v205
    %385 = vmatprep.subr.mxu0 %v209
    %386 = vmatpush1.msra.mxu0 %v208
    %387 = vmatprep.subr.mxu0 %v212
    %388 = vmatpush1.msra.mxu0 %v211
    %389 = vmatprep.subr.mxu0 %v215
    %390 = vmatpush1.msra.mxu0 %v214
    %391 = vmatprep.subr.mxu0 %v218
    %392 = vmatpush1.msra.mxu0 %v217
    %393 = vmatprep.subr.mxu0 %v221
    %394 = vmatpush1.msra.mxu0 %v220
    %395 = vmatprep.subr.mxu0 %v224
    %396 = vmatpush1.msra.mxu0 %v223
    %397 = vmatprep.subr.mxu0 %v227
    %398 = vmatpush1.msra.mxu0 %v226
    %399 = vmatprep.subr.mxu0 %v230
    %400 = vmatpush1.msra.mxu0 %v229
    %401 = vmatprep.subr.mxu0 %v233
    %402 = vmatpush1.msra.mxu0 %v232
    %403 = vmatprep.subr.mxu0 %v236
    %404 = vmatpush1.msra.mxu0 %v235
    %405 = vmatprep.subr.mxu0 %v239
    %406 = vmatpush1.msra.mxu0 %v238
    %407 = vmatprep.subr.mxu0 %v242
    %408 = vmatpush1.msra.mxu0 %v241
    %409 = vmatprep.subr.mxu0 %v245
    %410 = vmatpush1.msra.mxu0 %v244
    %411 = vmatprep.subr.mxu0 %v248
    %412 = vmatpush1.msra.mxu0 %v247
    %413 = vmatprep.subr.mxu0 %v251
    %414 = vmatpush1.msra.mxu0 %v250
    %415 = vmatprep.subr.mxu0 %v254
    %416 = vmatpush1.msra.mxu0 %v253
    %417 = vmatprep.subr.mxu0 %v257
    %418 = vmatpush1.msra.mxu0 %v256
    %419 = vmatprep.subr.mxu0 %v260
    %420 = vmatpush1.msra.mxu0 %v259
    %421 = vmatprep.subr.mxu0 %v263
    %422 = vmatpush1.msra.mxu0 %v262
    %423 = vmatprep.mubr.f32.mxu0 %v68
    %424 = vmatmul.mubr.f32.gmra.mrb[0].mxu0 %v67
    %v425 = vpop.f32.mrb[0].mxu0
    %v426 = vadd.f32 %v349, %v425
    %v427 = vpop.f32.mrb[0].mxu0
    %v428 = vadd.f32 %v351, %v427
    %429 = vmatprep.mubr.f32.mxu0 %v72
    %430 = vmatmul.mubr.f32.gmra.mrb[0].mxu0 %v71
    %v431 = vpop.f32.mrb[0].mxu0
    %v432 = vadd.f32 %v355, %v431
    %v433 = vpop.f32.mrb[0].mxu0
    %v434 = vadd.f32 %v357, %v433
    %435 = vdwg.mxu0
    %436 = vmatprep.subr.mxu0 0.0
    %437 = vmatpush1.msra.mxu0 %v75
    %438 = vmatprep.subr.mxu0 0.0
    %439 = vmatpush1.msra.mxu0 %v78
    %440 = vmatprep.subr.mxu0 0.0
    %441 = vmatpush1.msra.mxu0 %v81
    %442 = vmatprep.subr.mxu0 0.0
    %443 = vmatpush1.msra.mxu0 %v84
    %444 = vmatprep.subr.mxu0 0.0
    %445 = vmatpush1.msra.mxu0 %v87
    %446 = vmatprep.subr.mxu0 0.0
    %447 = vmatpush1.msra.mxu0 %v90
    %448 = vmatprep.subr.mxu0 0.0
    %449 = vmatpush1.msra.mxu0 %v93
    %450 = vmatprep.subr.mxu0 0.0
    %451 = vmatpush1.msra.mxu0 %v96
    %452 = vmatprep.subr.mxu0 0.0
    %453 = vmatpush1.msra.mxu0 %v99
    %454 = vmatprep.subr.mxu0 0.0
    %455 = vmatpush1.msra.mxu0 %v102
    %456 = vmatprep.subr.mxu0 0.0
    %457 = vmatpush1.msra.mxu0 %v105
    %458 = vmatprep.subr.mxu0 0.0
    %459 = vmatpush1.msra.mxu0 %v108
    %460 = vmatprep.subr.mxu0 0.0
    %461 = vmatpush1.msra.mxu0 %v111
    %462 = vmatprep.subr.mxu0 0.0
    %463 = vmatpush1.msra.mxu0 %v114
    %464 = vmatprep.subr.mxu0 0.0
    %465 = vmatpush1.msra.mxu0 %v117
    %466 = vmatprep.subr.mxu0 0.0
    %467 = vmatpush1.msra.mxu0 %v120
    %468 = vmatprep.subr.mxu0 0.0
    %469 = vmatpush1.msra.mxu0 %v123
    %470 = vmatprep.subr.mxu0 0.0
    %471 = vmatpush1.msra.mxu0 %v126
    %472 = vmatprep.subr.mxu0 0.0
    %473 = vmatpush1.msra.mxu0 %v129
    %474 = vmatprep.subr.mxu0 0.0
    %475 = vmatpush1.msra.mxu0 %v132
    %476 = vmatprep.subr.mxu0 0.0
    %477 = vmatpush1.msra.mxu0 %v135
    %478 = vmatprep.subr.mxu0 0.0
    %479 = vmatpush1.msra.mxu0 %v138
    %480 = vmatprep.subr.mxu0 0.0
    %481 = vmatpush1.msra.mxu0 %v141
    %482 = vmatprep.subr.mxu0 0.0
    %483 = vmatpush1.msra.mxu0 %v144
    %484 = vmatprep.subr.mxu0 0.0
    %485 = vmatpush1.msra.mxu0 %v147
    %486 = vmatprep.subr.mxu0 0.0
    %487 = vmatpush1.msra.mxu0 %v150
    %488 = vmatprep.subr.mxu0 0.0
    %489 = vmatpush1.msra.mxu0 %v153
    %490 = vmatprep.subr.mxu0 0.0
    %491 = vmatpush1.msra.mxu0 %v156
    %492 = vmatprep.subr.mxu0 0.0
    %493 = vmatpush1.msra.mxu0 %v159
    %494 = vmatprep.subr.mxu0 0.0
    %495 = vmatpush1.msra.mxu0 %v162
    %496 = vmatprep.subr.mxu0 0.0
    %497 = vmatpush1.msra.mxu0 %v165
    %498 = vmatprep.subr.mxu0 0.0
    %499 = vmatpush1.msra.mxu0 %v168
    %500 = vmatprep.mubr.f32.mxu0 %v66
    %501 = vmatmul.mubr.f32.gmra.mrb[0].mxu0 %v65
    %v502 = vpop.f32.mrb[0].mxu0
    %v503 = vadd.f32 %v278, %v502
    %v504 = vpop.f32.mrb[0].mxu0
    %505 = vmatprep.mubr.f32.mxu0 %v70
    %506 = vmatmul.mubr.f32.gmra.mrb[0].mxu0 %v69
    %v507 = vpop.f32.mrb[0].mxu0
    %v508 = vadd.f32 %v278, %v507
    %v509 = vpop.f32.mrb[0].mxu0
    %510 = vdwg.mxu0
    %511 = vmatprep.subr.mxu0 0.0
    %512 = vmatpush1.msra.mxu0 %v171
    %513 = vmatprep.subr.mxu0 0.0
    %514 = vmatpush1.msra.mxu0 %v174
    %515 = vmatprep.subr.mxu0 0.0
    %516 = vmatpush1.msra.mxu0 %v177
    %517 = vmatprep.subr.mxu0 0.0
    %518 = vmatpush1.msra.mxu0 %v180
    %519 = vmatprep.subr.mxu0 0.0
    %520 = vmatpush1.msra.mxu0 %v183
    %521 = vmatprep.subr.mxu0 0.0
    %522 = vmatpush1.msra.mxu0 %v186
    %523 = vmatprep.subr.mxu0 0.0
    %524 = vmatpush1.msra.mxu0 %v189
    %525 = vmatprep.subr.mxu0 0.0
    %526 = vmatpush1.msra.mxu0 %v192
    %527 = vmatprep.subr.mxu0 0.0
    %528 = vmatpush1.msra.mxu0 %v195
    %529 = vmatprep.subr.mxu0 0.0
    %530 = vmatpush1.msra.mxu0 %v198
    %531 = vmatprep.subr.mxu0 0.0
    %532 = vmatpush1.msra.mxu0 %v201
    %533 = vmatprep.subr.mxu0 0.0
    %534 = vmatpush1.msra.mxu0 %v204
    %535 = vmatprep.subr.mxu0 0.0
    %536 = vmatpush1.msra.mxu0 %v207
    %537 = vmatprep.subr.mxu0 0.0
    %538 = vmatpush1.msra.mxu0 %v210
    %539 = vmatprep.subr.mxu0 0.0
    %540 = vmatpush1.msra.mxu0 %v213
    %541 = vmatprep.subr.mxu0 0.0
    %542 = vmatpush1.msra.mxu0 %v216
    %543 = vmatprep.subr.mxu0 0.0
    %544 = vmatpush1.msra.mxu0 %v219
    %545 = vmatprep.subr.mxu0 0.0
    %546 = vmatpush1.msra.mxu0 %v222
    %547 = vmatprep.subr.mxu0 0.0
    %548 = vmatpush1.msra.mxu0 %v225
    %549 = vmatprep.subr.mxu0 0.0
    %550 = vmatpush1.msra.mxu0 %v228
    %551 = vmatprep.subr.mxu0 0.0
    %552 = vmatpush1.msra.mxu0 %v231
    %553 = vmatprep.subr.mxu0 0.0
    %554 = vmatpush1.msra.mxu0 %v234
    %555 = vmatprep.subr.mxu0 0.0
    %556 = vmatpush1.msra.mxu0 %v237
    %557 = vmatprep.subr.mxu0 0.0
    %558 = vmatpush1.msra.mxu0 %v240
    %559 = vmatprep.subr.mxu0 0.0
    %560 = vmatpush1.msra.mxu0 %v243
    %561 = vmatprep.subr.mxu0 0.0
    %562 = vmatpush1.msra.mxu0 %v246
    %563 = vmatprep.subr.mxu0 0.0
    %564 = vmatpush1.msra.mxu0 %v249
    %565 = vmatprep.subr.mxu0 0.0
    %566 = vmatpush1.msra.mxu0 %v252
    %567 = vmatprep.subr.mxu0 0.0
    %568 = vmatpush1.msra.mxu0 %v255
    %569 = vmatprep.subr.mxu0 0.0
    %570 = vmatpush1.msra.mxu0 %v258
    %571 = vmatprep.subr.mxu0 0.0
    %572 = vmatpush1.msra.mxu0 %v261
    %573 = vmatprep.subr.mxu0 0.0
    %574 = vmatpush1.msra.mxu0 %v264
    %575 = vmatprep.mubr.f32.mxu0 %v68
    %576 = vmatmul.mubr.f32.gmra.mrb[0].mxu0 %v67
    %v577 = vpop.f32.mrb[0].mxu0
    %v578 = vadd.f32 %v503, %v577
    %v579 = vpop.f32.mrb[0].mxu0
    %580 = vmatprep.mubr.f32.mxu0 %v72
    %581 = vmatmul.mubr.f32.gmra.mrb[0].mxu0 %v71
    %v582 = vpop.f32.mrb[0].mxu0
    %v583 = vadd.f32 %v508, %v582
    %v584 = vpop.f32.mrb[0].mxu0
    %585 = vdwg.mxu0
    %v586 = vtanh.pop %v426
    %v587 = vtanh.pop %v432
    %v588 = vxor.u32 %v428, 2147483648
    %v589 = vxor.u32 %v434, 2147483648
    %v590 = vmul.f32 %v588, 1.442695
    %v591 = vpow.pop %v590
    %v592 = vmul.f32 %v589, 1.442695
    %v593 = vpow.pop %v592
    %v594 = vadd.f32 %v591, 1.0
    %v595 = vadd.f32 %v593, 1.0
    %v596 = vrcp.pop %v594
    %v597 = vmul.f32 1.0, %v596
    %v598 = vrcp.pop %v595
    %v599 = vmul.f32 1.0, %v598
    %v600 = vmul.f32 %v586, %v597
    %v601 = vmul.f32 %v587, %v599
    %v602 = vld [vmem:[#allocation7] sm:$0xff]
    %v603 = vld [vmem:[#allocation7 + $0x8] sm:$0xff]
    %v604 = vld [vmem:[#allocation7 + $0x10] sm:$0xff]
    %v605 = vld [vmem:[#allocation7 + $0x18] sm:$0xff]
    %v606 = vld [vmem:[#allocation7 + $0x20] sm:$0xff]
    %v607 = vld [vmem:[#allocation7 + $0x28] sm:$0xff]
    %v608 = vld [vmem:[#allocation7 + $0x30] sm:$0xff]
    %v609 = vld [vmem:[#allocation7 + $0x38] sm:$0xff]
    %v610 = vld [vmem:[#allocation7 + $0x40] sm:$0xff]
    %v611 = vld [vmem:[#allocation7 + $0x48] sm:$0xff]
    %v612 = vld [vmem:[#allocation7 + $0x50] sm:$0xff]
    %v613 = vld [vmem:[#allocation7 + $0x58] sm:$0xff]
    %v614 = vld [vmem:[#allocation7 + $0x60] sm:$0xff]
    %v615 = vld [vmem:[#allocation7 + $0x68] sm:$0xff]
    %v616 = vld [vmem:[#allocation7 + $0x70] sm:$0xff]
    %v617 = vld [vmem:[#allocation7 + $0x78] sm:$0xff]
    %v618 = vld [vmem:[%s4] sm:$0x1]
    %v620 = vlaneseq
    %v621 = vshrl.u32 %v620, 7
    %v622 = vsub.s32 0, %v621
    %v623 = vrot.slane %v618, %v622
    %625 = vmatprep.subr.mxu0 0.0
    %626 = vmatpush1.msra.mxu0 %v602
    %627 = vmatprep.subr.mxu0 0.0
    %628 = vmatpush1.msra.mxu0 %v603
    %629 = vmatprep.subr.mxu0 0.0
    %630 = vmatpush1.msra.mxu0 %v604
    %631 = vmatprep.subr.mxu0 0.0
    %632 = vmatpush1.msra.mxu0 %v605
    %633 = vmatprep.subr.mxu0 0.0
    %634 = vmatpush1.msra.mxu0 %v606
    %635 = vmatprep.subr.mxu0 0.0
    %636 = vmatpush1.msra.mxu0 %v607
    %637 = vmatprep.subr.mxu0 0.0
    %638 = vmatpush1.msra.mxu0 %v608
    %639 = vmatprep.subr.mxu0 0.0
    %640 = vmatpush1.msra.mxu0 %v609
    %641 = vmatprep.subr.mxu0 0.0
    %642 = vmatpush1.msra.mxu0 %v610
    %643 = vmatprep.subr.mxu0 0.0
    %644 = vmatpush1.msra.mxu0 %v611
    %645 = vmatprep.subr.mxu0 0.0
    %646 = vmatpush1.msra.mxu0 %v612
    %647 = vmatprep.subr.mxu0 0.0
    %648 = vmatpush1.msra.mxu0 %v613
    %649 = vmatprep.subr.mxu0 0.0
    %650 = vmatpush1.msra.mxu0 %v614
    %651 = vmatprep.subr.mxu0 0.0
    %652 = vmatpush1.msra.mxu0 %v615
    %653 = vmatprep.subr.mxu0 0.0
    %654 = vmatpush1.msra.mxu0 %v616
    %655 = vmatprep.subr.mxu0 0.0
    %656 = vmatpush1.msra.mxu0 %v617
    %657 = vmatprep.subr.mxu0 0.0
    %658 = vmatpush1.msra.mxu0 0.0
    %659 = vmatprep.subr.mxu0 0.0
    %660 = vmatpush1.msra.mxu0 0.0
    %661 = vmatprep.subr.mxu0 0.0
    %662 = vmatpush1.msra.mxu0 0.0
    %663 = vmatprep.subr.mxu0 0.0
    %664 = vmatpush1.msra.mxu0 0.0
    %665 = vmatprep.subr.mxu0 0.0
    %666 = vmatpush1.msra.mxu0 0.0
    %667 = vmatprep.subr.mxu0 0.0
    %668 = vmatpush1.msra.mxu0 0.0
    %669 = vmatprep.subr.mxu0 0.0
    %670 = vmatpush1.msra.mxu0 0.0
    %671 = vmatprep.subr.mxu0 0.0
    %672 = vmatpush1.msra.mxu0 0.0
    %673 = vmatprep.subr.mxu0 0.0
    %674 = vmatpush1.msra.mxu0 0.0
    %675 = vmatprep.subr.mxu0 0.0
    %676 = vmatpush1.msra.mxu0 0.0
    %677 = vmatprep.subr.mxu0 0.0
    %678 = vmatpush1.msra.mxu0 0.0
    %679 = vmatprep.subr.mxu0 0.0
    %680 = vmatpush1.msra.mxu0 0.0
    %681 = vmatprep.subr.mxu0 0.0
    %682 = vmatpush1.msra.mxu0 0.0
    %683 = vmatprep.subr.mxu0 0.0
    %684 = vmatpush1.msra.mxu0 0.0
    %685 = vmatprep.subr.mxu0 0.0
    %686 = vmatpush1.msra.mxu0 0.0
    %687 = vmatprep.subr.mxu0 0.0
    %688 = vmatpush1.msra.mxu0 0.0
    %689 = vmatprep.mubr.f32.mxu0 0.0
    %690 = vmatmul.mubr.f32.gmra.mrb[0].mxu0 %v600
    %v691 = vpop.f32.mrb[0].mxu0
    %v692 = vadd.f32 %v623, %v691
    %v693 = vpop.f32.mrb[0].mxu0
    %694 = vmatprep.mubr.f32.mxu0 0.0
    %695 = vmatmul.mubr.f32.gmra.mrb[0].mxu0 %v601
    %v696 = vpop.f32.mrb[0].mxu0
    %v697 = vadd.f32 %v623, %v696
    %v698 = vpop.f32.mrb[0].mxu0
    %699 = vdwg.mxu0
    %v700 = vrot.slane %v692, 4
    %v701 = vmax.f32 %v692, %v700
    %v702 = vrot.slane %v701, 2
    %v703 = vmax.f32 %v701, %v702
    %v704 = vrot.slane %v703, 1
    %v705 = vmax.f32 %v703, %v704
    %v706 = vrot.slane %v697, 4
    %v707 = vmax.f32 %v697, %v706
    %v708 = vrot.slane %v707, 2
    %v709 = vmax.f32 %v707, %v708
    %v710 = vrot.slane %v709, 1
    %v711 = vmax.f32 %v709, %v710
    %v712 = vsub.f32 %v692, %v705
    %v713 = vsub.f32 %v697, %v711
    %v714 = vmul.f32 %v712, 1.442695
    %v715 = vpow.pop %v714
    %v716 = vmul.f32 %v713, 1.442695
    %v717 = vpow.pop %v716
    %v718 = vrot.slane %v715, 4
    %v719 = vadd.f32 %v715, %v718
    %v720 = vrot.slane %v719, 2
    %v721 = vadd.f32 %v719, %v720
    %v722 = vrot.slane %v721, 1
    %v723 = vadd.f32 %v721, %v722
    %v724 = vrot.slane %v717, 4
    %v725 = vadd.f32 %v717, %v724
    %v726 = vrot.slane %v725, 2
    %v727 = vadd.f32 %v725, %v726
    %v728 = vrot.slane %v727, 1
    %v729 = vadd.f32 %v727, %v728
    %v730 = vrcp.pop %v723
    %v731 = vrcp.pop %v729
    %v732 = vmul.f32 %v715, %v730
    %v733 = vmul.f32 %v717, %v731
    %v734 = vmul.f32 %v732, %v578
    %v735 = vmul.f32 %v733, %v583
    %v736 = vrot.slane %v734, 4
    %v737 = vadd.f32 %v734, %v736
    %v738 = vrot.slane %v737, 2
    %v739 = vadd.f32 %v737, %v738
    %v740 = vrot.slane %v739, 1
    %v741 = vadd.f32 %v739, %v740
    %v742 = vrot.slane %v735, 4
    %v743 = vadd.f32 %v735, %v742
    %v744 = vrot.slane %v743, 2
    %v745 = vadd.f32 %v743, %v744
    %v746 = vrot.slane %v745, 1
    %v747 = vadd.f32 %v745, %v746
    %vm750 = vcmask 1041409
    %v751 = vsel %vm750, %v747, %v741
    %753 = vst [vmem:[#allocation8] sm:$0x3] %v751
    %754 = vst [vmem:[#allocation9] sm:$0xff] %v732
    %755 = vst [vmem:[#allocation9 + $0x8] sm:$0xff] %v733
    // Predicated region
    $region34: #{tpu_custom_call.1} parent=1 // pred_check
      _
    $region35: #{tpu_custom_call.1} parent=1 // pred_check_branch
      %757 = sbr.rel (0) target = $region37
    $region36: #{tpu_custom_call.1} parent=1 // pred_region
      %s759 = ssub.s32 32, 32
      %760 = vsyncadd [#allocation4], %s759
      %s762 = sshll.u32 [#allocation8], 4
      %s763 = int_to_ptr.vmem [resolvable:$true] %s762
      %765 = dma.vmem_to_hbm [thread:$0]  %s763, 32, %s5, [#allocation4]
    $region37: #{tpu_custom_call.1} parent=1 // pred_fallthru
      _
    // Predicated region
    $region38: #{tpu_custom_call.1} parent=1 // pred_check
      _
    $region39: #{tpu_custom_call.1} parent=1 // pred_check_branch
      %767 = sbr.rel (0) target = $region41
    $region40: #{tpu_custom_call.1} parent=1 // pred_region
      %s769 = ssub.s32 256, 256
      %770 = vsyncadd [#allocation10], %s769
      %s771 = sshll.u32 [#allocation9], 4
      %s772 = int_to_ptr.vmem [resolvable:$true] %s771
      %777 = dma.vmem_to_hbm [thread:$0]  %s772, 256, %s6, [#allocation10], 128, 128, 8
    $region41: #{tpu_custom_call.1} parent=1 // pred_fallthru
      _
    // Predicated region
    $region42: #{tpu_custom_call.1} parent=1 // pred_check
      _
    $region43: #{tpu_custom_call.1} parent=1 // pred_check_branch
      %779 = sbr.rel (0) target = $region45
    $region44: #{tpu_custom_call.1} parent=1 // pred_region
      %780 = dma.done [#allocation4], 32
    $region45: #{tpu_custom_call.1} parent=1 // pred_fallthru
      _
    // Predicated region
    $region46: #{tpu_custom_call.1} parent=1 // pred_check
      _
    $region47: #{tpu_custom_call.1} parent=1 // pred_check_branch
      %782 = sbr.rel (0) target = $region49
    $region48: #{tpu_custom_call.1} parent=1 // pred_region
      %783 = dma.done [#allocation10], 256
    $region49: #{tpu_custom_call.1} parent=1 // pred_fallthru
      _
    %784 = vsyncpa [#allocation3], 1
    %785 = vsyncpa [#allocation6], 1
    %786 = vsyncpa [#allocation4], 1
    %787 = vsyncpa [#allocation10], 1

</llo_original>
